<compile_context>
chip_gen: v6e
topology: v6e:2x2x1
jax: 0.10.0
libtpu: 0.0.40
codegen_flags: <defaults>
</compile_context>

<pallas_src>
import functools

import jax
import jax.numpy as jnp
from jax.experimental import pallas as pl
from jax.experimental.pallas import tpu as pltpu


def _round_up(x, m):
    return ((x + m - 1) // m) * m


def _logits_lse_kernel(x_ref, w_ref, b_ref, out_ref, lse_ref,
                       acc_ref, m_ref, l_ref, *,
                       fused, vocab, tn, mask_cols):
    """grid = (i: row tiles, j: vocab tiles, k: d_model tiles).

    acc_ref: (tm, tn) f32 accumulator over k (bias folded in at k==0).
    m_ref/l_ref: (tm, 1) f32 running max / sum-exp across vocab tiles j.
    fused=True  -> single vocab tile: write final log-probs directly.
    fused=False -> write raw logits; lse written at the last vocab tile.
    mask_cols   -> last vocab tile is ragged: mask columns >= vocab.
    """
    j = pl.program_id(1)
    k = pl.program_id(2)
    nj = pl.num_programs(1)
    nk = pl.num_programs(2)

    @pl.when(jnp.logical_and(j == 0, k == 0))
    def _init_stats():
        m_ref[...] = jnp.full_like(m_ref, -jnp.inf)
        l_ref[...] = jnp.zeros_like(l_ref)

    # Fold the bias into the accumulator init instead of a post-dot add.
    @pl.when(k == 0)
    def _init_acc():
        acc_ref[...] = jnp.broadcast_to(
            b_ref[...].astype(jnp.float32), acc_ref.shape)

    acc_ref[...] += jnp.dot(x_ref[...], w_ref[...],
                            preferred_element_type=jnp.float32)

    @pl.when(k == nk - 1)
    def _finalize_vocab_tile():
        logits = acc_ref[...]
        if mask_cols:
            # Ragged last vocab tile: columns >= vocab hold garbage (no weight
            # padding is done).  Mask them to -inf before the max / sum-exp;
            # their output columns are out-of-bounds and write-masked anyway.
            col = jax.lax.broadcasted_iota(jnp.int32, logits.shape, 1) + j * tn
            logits = jnp.where(col < vocab, logits, -jnp.inf)
        m_prev = m_ref[...]
        m_new = jnp.maximum(m_prev, jnp.max(logits, axis=-1, keepdims=True))
        l_new = (l_ref[...] * jnp.exp(m_prev - m_new)
                 + jnp.sum(jnp.exp(logits - m_new), axis=-1, keepdims=True))
        m_ref[...] = m_new
        l_ref[...] = l_new
        if fused:
            # Single vocab tile: the log-sum-exp is already final here.
            lse = m_new + jnp.log(l_new)
            out_ref[...] = (logits - lse).astype(out_ref.dtype)
        else:
            out_ref[...] = logits.astype(out_ref.dtype)

    @pl.when(jnp.logical_and(k == nk - 1, j == nj - 1))
    def _write_lse():
        lse_ref[...] = m_ref[...] + jnp.log(l_ref[...])


def _subtract_lse_kernel(logits_ref, lse_ref, o_ref):
    # o = logits - lse (broadcast over vocab), cast to the output dtype.
    o_ref[...] = (logits_ref[...] - lse_ref[...]).astype(o_ref.dtype)


def generator_forward(x, weight, bias, *, tm=512, tn=512, tk=512,
                      max_single_k=8192, matmul_dtype=jnp.bfloat16,
                      fused=None, vmem_limit_bytes=56 * 1024 * 1024):
    """log_softmax(x @ weight + bias, axis=-1).

    x: [..., d_model]; weight: [d_model, vocab]; bias: [vocab].

    matmul_dtype: dtype of the MXU operands (default bf16 on all TPU
      generations; f32 accumulation and f32 softmax math are preserved).
      Store the weight already in this dtype (init_generator_params) to avoid
      a per-call full-weight cast.  Pass None to use the operands as-is.
    fused: None -> auto (single-pass when the whole padded vocab row block
      fits the VMEM budget); True/False forces the path.
    vmem_limit_bytes: scoped VMEM limit; <=~56 MiB also fits v7x, raise to
      ~96 MiB on v5e/v6e to widen the fused path / allow tm=768-1024.
    """
    d_model, vocab = weight.shape
    batch_shape = x.shape[:-1]
    out_dtype = x.dtype
    x2d = x.reshape(-1, d_model)
    n = x2d.shape[0]

    # ---- MXU operand dtype.  Casting x is cheap (x << weight); the weight
    # should already be stored in matmul_dtype so no per-call copy happens.
    if matmul_dtype is not None:
        if x2d.dtype != matmul_dtype:
            x2d = x2d.astype(matmul_dtype)
        if weight.dtype != matmul_dtype:
            weight = weight.astype(matmul_dtype)

    bias2d = bias.reshape(1, vocab).astype(jnp.float32)

    # ---- K (reduction) tiling.  Common case: d_model <= max_single_k -> no K
    # tiling; the x block index then only changes with the row tile, so x is
    # VMEM-resident across the whole vocab sweep (no re-streaming).
    if d_model <= max_single_k:
        tk_eff = d_model
        kp = d_model
    else:
        tk_eff = None
        upper = min(tk, (d_model // 128) * 128)
        for cand in range(upper, 127, -128):
            if d_model % cand == 0:
                tk_eff = cand
                break
        if tk_eff is None:
            tk_eff = tk
        kp = _round_up(d_model, tk_eff)
        if kp != d_model:
            # Rare fallback (huge d_model, no 128-multiple divisor <= tk):
            # zero-pad the reduction dim (costs one weight copy per call).
            weight = jnp.pad(weight, ((0, kp - d_model), (0, 0)))
            x2d = jnp.pad(x2d, ((0, 0), (0, kp - d_model)))

    # ---- Row tiling: no row padding; the ragged last row block is handled by
    # Pallas write masking.
    tm_eff = min(tm, _round_up(n, 8))

    # ---- Vocab tiling: never pad/copy the weight; lane-dense 128-multiple
    # tiles, ragged last tile masked inside the kernel.
    vp = _round_up(vocab, 128)

    x_b = jnp.dtype(x2d.dtype).itemsize
    w_b = jnp.dtype(weight.dtype).itemsize
    o_b = jnp.dtype(out_dtype).itemsize

    def vmem_est(tm_, tn_):
        return (tm_ * tn_ * 4                 # f32 accumulator
                + 2 * tm_ * tk_eff * x_b      # double-buffered x tile
                + 2 * tk_eff * tn_ * w_b      # double-buffered weight tile
                + 2 * tn_ * 4                 # double-buffered bias tile
                + 2 * tm_ * tn_ * o_b         # double-buffered out tile
                + 6 * tm_ * 4)                # lse out + m/l scratch

    budget = int(0.8 * vmem_limit_bytes)
    if fused is None:
        fused = vmem_est(tm_eff, vp) <= budget
    tn_eff = vp if fused else min(tn, vp)
    # Shrink the row tile if the chosen tile set would not fit the budget.
    while vmem_est(tm_eff, tn_eff) > budget and tm_eff > 8:
        tm_eff = max(8, ((tm_eff // 2) + 7) // 8 * 8)

    num_i = pl.cdiv(n, tm_eff)
    num_j = pl.cdiv(vocab, tn_eff)
    num_k = kp // tk_eff

    kernel_a = functools.partial(
        _logits_lse_kernel, fused=fused, vocab=vocab, tn=tn_eff,
        mask_cols=(vocab % tn_eff != 0))

    cost1 = pl.CostEstimate(
        flops=2 * n * kp * vocab,
        transcendentals=n * vocab + 2 * n,
        bytes_accessed=(n * kp * x_b + num_i * kp * vocab * w_b
                        + n * vocab * o_b + n * 4))

    logits, lse = pl.pallas_call(
        kernel_a,
        out_shape=(
            jax.ShapeDtypeStruct((n, vocab), out_dtype),
            jax.ShapeDtypeStruct((n, 1), jnp.float32),
        ),
        grid_spec=pltpu.PrefetchScalarGridSpec(
            num_scalar_prefetch=0,
            grid=(num_i, num_j, num_k),
            in_specs=[
                pl.BlockSpec((tm_eff, tk_eff), lambda i, j, k: (i, k)),
                pl.BlockSpec((tk_eff, tn_eff), lambda i, j, k: (k, j)),
                pl.BlockSpec((1, tn_eff), lambda i, j, k: (0, j)),
            ],
            out_specs=[
                pl.BlockSpec((tm_eff, tn_eff), lambda i, j, k: (i, j)),
                pl.BlockSpec((tm_eff, 1), lambda i, j, k: (i, 0)),
            ],
            scratch_shapes=[
                pltpu.VMEM((tm_eff, tn_eff), jnp.float32),   # acc
                pltpu.VMEM((tm_eff, 1), jnp.float32),        # running max
                pltpu.VMEM((tm_eff, 1), jnp.float32),        # running sum-exp
            ],
        ),
        compiler_params=pltpu.CompilerParams(
            dimension_semantics=("parallel", "arbitrary", "arbitrary"),
            vmem_limit_bytes=vmem_limit_bytes),
        cost_estimate=cost1,
    )(x2d, weight, bias2d)

    if fused:
        out = logits
    else:
        # Cheap elementwise second pass with its own large lane-dense tiles;
        # the output aliases the logits intermediate (same shape & dtype), so
        # no extra HBM allocation and one fewer stream.
        tm2 = min(512, _round_up(n, 8))
        tn2 = min(2048, vp)
        cost2 = pl.CostEstimate(
            flops=n * vocab, transcendentals=0,
            bytes_accessed=2 * n * vocab * o_b + n * 4)
        out = pl.pallas_call(
            _subtract_lse_kernel,
            out_shape=jax.ShapeDtypeStruct((n, vocab), out_dtype),
            grid_spec=pltpu.PrefetchScalarGridSpec(
                num_scalar_prefetch=0,
                grid=(pl.cdiv(n, tm2), pl.cdiv(vocab, tn2)),
                in_specs=[
                    pl.BlockSpec((tm2, tn2), lambda i, j: (i, j)),
                    pl.BlockSpec((tm2, 1), lambda i, j: (i, 0)),
                ],
                out_specs=pl.BlockSpec((tm2, tn2), lambda i, j: (i, j)),
            ),
            compiler_params=pltpu.CompilerParams(
                dimension_semantics=("parallel", "parallel"),
                vmem_limit_bytes=vmem_limit_bytes),
            cost_estimate=cost2,
            input_output_aliases={0: 0},
        )(logits, lse)

    return out.reshape(*batch_shape, vocab)


def init_generator_params(key, d_model, vocab, dtype=jnp.bfloat16):
    """nn.Linear-style init; weight stored as [d_model, vocab] in `dtype`
    (pre-cast once so the forward never copies the weight per call)."""
    kw, kb = jax.random.split(key)
    bound = 1.0 / (d_model ** 0.5)
    weight = jax.random.uniform(kw, (d_model, vocab), jnp.float32,
                                -bound, bound).astype(dtype)
    bias = jax.random.uniform(kb, (vocab,), jnp.float32, -bound, bound)
    return weight, bias


if __name__ == "__main__":
    key = jax.random.PRNGKey(0)
    k_x1, k_p1, k_x2, k_p2 = jax.random.split(key, 4)

    # --- Test 1: small shapes, fused single-pass path, weight stored in bf16
    # (default bf16 MXU operands, f32 accumulation + softmax). ---
    batch, seq, d_model, vocab = 2, 8, 32, 128
    x = jax.random.normal(k_x1, (batch, seq, d_model), jnp.float32)
    weight, bias = init_generator_params(k_p1, d_model, vocab,
                                         dtype=jnp.bfloat16)

    out = generator_forward(x, weight, bias)
    out = jax.block_until_ready(out)
    ref = jax.nn.log_softmax(x @ weight.astype(jnp.float32) + bias, axis=-1)
    assert out.shape == (batch, seq, vocab)
    assert jnp.allclose(out, ref, atol=3e-2, rtol=3e-2)

    # --- Test 2: two-pass online-lse path with tiled K, tiled vocab, ragged
    # rows and a ragged (in-kernel masked) last vocab tile; f32 MXU operands
    # for a tight numerical check.  Small tiles are forced to exercise it. ---
    b2, s2, d2, v2 = 2, 13, 256, 200   # n=26 rows (ragged vs tm=16), vocab 200
    x2 = jax.random.normal(k_x2, (b2, s2, d2), jnp.float32)
    w2, bi2 = init_generator_params(k_p2, d2, v2, dtype=jnp.float32)

    out2 = generator_forward(x2, w2, bi2, tm=16, tn=128, tk=128,
                             max_single_k=128, matmul_dtype=None, fused=False)
    out2 = jax.block_until_ready(out2)
    ref2 = jax.nn.log_softmax(x2 @ w2 + bi2, axis=-1)
    assert out2.shape == (b2, s2, v2)
    assert jnp.allclose(out2, ref2, atol=1e-4, rtol=1e-4)

    # --- Test 3: bf16 activations -> bf16 two-pass intermediate, second pass
    # aliased in-place over the intermediate. ---
    out3 = generator_forward(x2.astype(jnp.bfloat16), w2, bi2,
                             tm=16, tn=128, tk=128, max_single_k=128,
                             fused=False)
    out3 = jax.block_until_ready(out3)
    assert out3.dtype == jnp.bfloat16
    assert jnp.allclose(out3.astype(jnp.float32), ref2, atol=1e-1, rtol=5e-2)

    print("KERNEL_OK")
</pallas_src>

<mosaic_0001>
module attributes {stable_mosaic.version = 11 : i64} {
  func.func @_logits_lse_kernel(%arg0: i32, %arg1: i32, %arg2: i32, %arg3: memref<16x32xbf16, #tpu.memory_space<vmem>>, %arg4: memref<32x128xbf16, #tpu.memory_space<vmem>>, %arg5: memref<1x128xf32, #tpu.memory_space<vmem>>, %arg6: memref<16x128xf32, #tpu.memory_space<vmem>>, %arg7: memref<16x1xf32, #tpu.memory_space<vmem>>, %arg8: memref<16x128xf32, #tpu.memory_space<vmem>>, %arg9: memref<16x1xf32, #tpu.memory_space<vmem>>, %arg10: memref<16x1xf32, #tpu.memory_space<vmem>>) attributes {dimension_semantics = [#tpu.dimension_semantics<parallel>, #tpu.dimension_semantics<arbitrary>, #tpu.dimension_semantics<arbitrary>], iteration_bounds = array<i64: 1, 1, 1>, scalar_prefetch = 0 : i64, scratch_operands = 3 : i64, tpu.core_type = #tpu.core_type<tc>, window_params = [{transform_indices = @transform_0, window_bounds = array<i64: 16, 32>}, {transform_indices = @transform_1, window_bounds = array<i64: 32, 128>}, {transform_indices = @transform_2, window_bounds = array<i64: 1, 128>}, {transform_indices = @transform_3, window_bounds = array<i64: 16, 128>}, {transform_indices = @transform_4, window_bounds = array<i64: 16, 1>}]} {
    %c0_i32 = arith.constant 0 : i32
    %0 = arith.cmpi eq, %arg1, %c0_i32 : i32
    %c0_i32_0 = arith.constant 0 : i32
    %1 = arith.cmpi eq, %arg2, %c0_i32_0 : i32
    %2 = arith.andi %0, %1 : i1
    %3 = arith.extui %2 : i1 to i32
    %c0_i32_1 = arith.constant 0 : i32
    %4 = arith.cmpi ne, %3, %c0_i32_1 : i32
    scf.if %4 {
      %cst_16 = arith.constant 0xFF800000 : f32
      %22 = vector.broadcast %cst_16 : f32 to vector<16x1xf32>
      %c0_17 = arith.constant 0 : index
      %c0_18 = arith.constant 0 : index
      %23 = vector.load %arg9[%c0_17, %c0_18] : memref<16x1xf32, #tpu.memory_space<vmem>>, vector<16x1xf32>
      tpu.vector_store %arg9[%c0_17, %c0_18], %22 {strides = array<i32>} : memref<16x1xf32, #tpu.memory_space<vmem>>, vector<16x1xf32>,
      %cst_19 = arith.constant 0.000000e+00 : f32
      %24 = vector.broadcast %cst_19 : f32 to vector<16x1xf32>
      %c0_20 = arith.constant 0 : index
      %c0_21 = arith.constant 0 : index
      %25 = vector.load %arg10[%c0_20, %c0_21] : memref<16x1xf32, #tpu.memory_space<vmem>>, vector<16x1xf32>
      tpu.vector_store %arg10[%c0_20, %c0_21], %24 {strides = array<i32>} : memref<16x1xf32, #tpu.memory_space<vmem>>, vector<16x1xf32>,
    } else {
    }
    %c0_i32_2 = arith.constant 0 : i32
    %5 = arith.cmpi eq, %arg2, %c0_i32_2 : i32
    %6 = arith.extui %5 : i1 to i32
    %c0_i32_3 = arith.constant 0 : i32
    %7 = arith.cmpi ne, %6, %c0_i32_3 : i32
    scf.if %7 {
      %c0_16 = arith.constant 0 : index
      %c0_17 = arith.constant 0 : index
      %22 = vector.load %arg5[%c0_16, %c0_17] : memref<1x128xf32, #tpu.memory_space<vmem>>, vector<1x128xf32>
      %23 = vector.shape_cast %22 : vector<1x128xf32> to vector<1x128xf32>
      %24 = vector.broadcast %23 : vector<1x128xf32> to vector<16x128xf32>
      %c0_18 = arith.constant 0 : index
      %c0_19 = arith.constant 0 : index
      %25 = vector.load %arg8[%c0_18, %c0_19] : memref<16x128xf32, #tpu.memory_space<vmem>>, vector<16x128xf32>
      tpu.vector_store %arg8[%c0_18, %c0_19], %24 {strides = array<i32>} : memref<16x128xf32, #tpu.memory_space<vmem>>, vector<16x128xf32>,
    } else {
    }
    %c0 = arith.constant 0 : index
    %c0_4 = arith.constant 0 : index
    %8 = vector.load %arg8[%c0, %c0_4] : memref<16x128xf32, #tpu.memory_space<vmem>>, vector<16x128xf32>
    %c0_5 = arith.constant 0 : index
    %c0_6 = arith.constant 0 : index
    %9 = vector.load %arg3[%c0_5, %c0_6] : memref<16x32xbf16, #tpu.memory_space<vmem>>, vector<16x32xbf16>
    %c0_7 = arith.constant 0 : index
    %c0_8 = arith.constant 0 : index
    %10 = vector.load %arg4[%c0_7, %c0_8] : memref<32x128xbf16, #tpu.memory_space<vmem>>, vector<32x128xbf16>
    %cst = arith.constant dense<0.000000e+00> : vector<16x128xf32>
    %11 = tpu.matmul %9, %10, %cst {dimension_numbers = #tpu.dot_dimension_numbers<[1], [0], [0], [1], [0, 0, 1, 1], [], []>} : vector<16x32xbf16>, vector<32x128xbf16>, vector<16x128xf32> -> vector<16x128xf32>
    %12 = arith.addf %8, %11 : vector<16x128xf32>
    %c0_9 = arith.constant 0 : index
    %c0_10 = arith.constant 0 : index
    %13 = vector.load %arg8[%c0_9, %c0_10] : memref<16x128xf32, #tpu.memory_space<vmem>>, vector<16x128xf32>
    tpu.vector_store %arg8[%c0_9, %c0_10], %12 {strides = array<i32>} : memref<16x128xf32, #tpu.memory_space<vmem>>, vector<16x128xf32>,
    %c0_i32_11 = arith.constant 0 : i32
    %14 = arith.cmpi eq, %arg2, %c0_i32_11 : i32
    %15 = arith.extui %14 : i1 to i32
    %c0_i32_12 = arith.constant 0 : i32
    %16 = arith.cmpi ne, %15, %c0_i32_12 : i32
    scf.if %16 {
      %c0_16 = arith.constant 0 : index
      %c0_17 = arith.constant 0 : index
      %22 = vector.load %arg8[%c0_16, %c0_17] : memref<16x128xf32, #tpu.memory_space<vmem>>, vector<16x128xf32>
      %c0_18 = arith.constant 0 : index
      %c0_19 = arith.constant 0 : index
      %23 = vector.load %arg9[%c0_18, %c0_19] : memref<16x1xf32, #tpu.memory_space<vmem>>, vector<16x1xf32>
      %cst_20 = arith.constant dense<0xFF800000> : vector<16xf32>
      %24 = vector.multi_reduction <maximumf>, %22, %cst_20 [1] : vector<16x128xf32> to vector<16xf32>
      %25 = vector.shape_cast %24 : vector<16xf32> to vector<16x1xf32>
      %26 = arith.maximumf %23, %25 : vector<16x1xf32>
      %c0_21 = arith.constant 0 : index
      %c0_22 = arith.constant 0 : index
      %27 = vector.load %arg10[%c0_21, %c0_22] : memref<16x1xf32, #tpu.memory_space<vmem>>, vector<16x1xf32>
      %28 = arith.subf %23, %26 : vector<16x1xf32>
      %29 = math.exp %28 : vector<16x1xf32>
      %30 = arith.mulf %27, %29 : vector<16x1xf32>
      %31 = vector.broadcast %26 : vector<16x1xf32> to vector<16x128xf32>
      %32 = arith.subf %22, %31 : vector<16x128xf32>
      %33 = math.exp %32 : vector<16x128xf32>
      %cst_23 = arith.constant dense<0.000000e+00> : vector<16xf32>
      %34 = vector.multi_reduction <add>, %33, %cst_23 [1] : vector<16x128xf32> to vector<16xf32>
      %35 = vector.shape_cast %34 : vector<16xf32> to vector<16x1xf32>
      %36 = arith.addf %30, %35 : vector<16x1xf32>
      %c0_24 = arith.constant 0 : index
      %c0_25 = arith.constant 0 : index
      %37 = vector.load %arg9[%c0_24, %c0_25] : memref<16x1xf32, #tpu.memory_space<vmem>>, vector<16x1xf32>
      tpu.vector_store %arg9[%c0_24, %c0_25], %26 {strides = array<i32>} : memref<16x1xf32, #tpu.memory_space<vmem>>, vector<16x1xf32>,
      %c0_26 = arith.constant 0 : index
      %c0_27 = arith.constant 0 : index
      %38 = vector.load %arg10[%c0_26, %c0_27] : memref<16x1xf32, #tpu.memory_space<vmem>>, vector<16x1xf32>
      tpu.vector_store %arg10[%c0_26, %c0_27], %36 {strides = array<i32>} : memref<16x1xf32, #tpu.memory_space<vmem>>, vector<16x1xf32>,
      %39 = math.log %36 : vector<16x1xf32>
      %40 = arith.addf %26, %39 : vector<16x1xf32>
      %41 = vector.broadcast %40 : vector<16x1xf32> to vector<16x128xf32>
      %42 = arith.subf %22, %41 : vector<16x128xf32>
      %c0_28 = arith.constant 0 : index
      %c0_29 = arith.constant 0 : index
      %43 = vector.load %arg6[%c0_28, %c0_29] : memref<16x128xf32, #tpu.memory_space<vmem>>, vector<16x128xf32>
      tpu.vector_store %arg6[%c0_28, %c0_29], %42 {strides = array<i32>} : memref<16x128xf32, #tpu.memory_space<vmem>>, vector<16x128xf32>,
    } else {
    }
    %c0_i32_13 = arith.constant 0 : i32
    %17 = arith.cmpi eq, %arg2, %c0_i32_13 : i32
    %c0_i32_14 = arith.constant 0 : i32
    %18 = arith.cmpi eq, %arg1, %c0_i32_14 : i32
    %19 = arith.andi %17, %18 : i1
    %20 = arith.extui %19 : i1 to i32
    %c0_i32_15 = arith.constant 0 : i32
    %21 = arith.cmpi ne, %20, %c0_i32_15 : i32
    scf.if %21 {
      %c0_16 = arith.constant 0 : index
      %c0_17 = arith.constant 0 : index
      %22 = vector.load %arg9[%c0_16, %c0_17] : memref<16x1xf32, #tpu.memory_space<vmem>>, vector<16x1xf32>
      %c0_18 = arith.constant 0 : index
      %c0_19 = arith.constant 0 : index
      %23 = vector.load %arg10[%c0_18, %c0_19] : memref<16x1xf32, #tpu.memory_space<vmem>>, vector<16x1xf32>
      %24 = math.log %23 : vector<16x1xf32>
      %25 = arith.addf %22, %24 : vector<16x1xf32>
      %c0_20 = arith.constant 0 : index
      %c0_21 = arith.constant 0 : index
      %26 = vector.load %arg7[%c0_20, %c0_21] : memref<16x1xf32, #tpu.memory_space<vmem>>, vector<16x1xf32>
      tpu.vector_store %arg7[%c0_20, %c0_21], %25 {strides = array<i32>} : memref<16x1xf32, #tpu.memory_space<vmem>>, vector<16x1xf32>,
    } else {
    }
    return
  }
  func.func @transform_0(%arg0: i32, %arg1: i32, %arg2: i32) -> (i32, i32) {
    %c0_i32 = arith.constant 0 : i32
    return %arg0, %arg2 : i32, i32
  }
  func.func @transform_1(%arg0: i32, %arg1: i32, %arg2: i32) -> (i32, i32) {
    %c0_i32 = arith.constant 0 : i32
    return %arg2, %arg1 : i32, i32
  }
  func.func @transform_2(%arg0: i32, %arg1: i32, %arg2: i32) -> (i32, i32) {
    %c0_i32 = arith.constant 0 : i32
    %c0_i32_0 = arith.constant 0 : i32
    return %c0_i32, %arg1 : i32, i32
  }
  func.func @transform_3(%arg0: i32, %arg1: i32, %arg2: i32) -> (i32, i32) {
    %c0_i32 = arith.constant 0 : i32
    return %arg0, %arg1 : i32, i32
  }
  func.func @transform_4(%arg0: i32, %arg1: i32, %arg2: i32) -> (i32, i32) {
    %c0_i32 = arith.constant 0 : i32
    %c0_i32_0 = arith.constant 0 : i32
    return %arg0, %c0_i32 : i32, i32
  }
}

</mosaic_0001>

<llo_original>
// kernel: tpu_custom_call.1
$region0: #{tpu_custom_call.1}
  #allocation0 [shape = 'u32[]', space=smem, size = 0x4, offset = 0x4, fixed_abs, tag = 'smem constant byte address 0x4 - core index']
  #allocation1 [shape = 'u32[144,128]{1,0:T(1,128)}', space=vmem, size = 0x12000, scoped, tag = 'internal scratch']
  #allocation2 [shape = 'f32[16,128]{1,0:T(8,128)}', space=vmem, size = 0x2000, scoped, tag = 'scratch operand']
  #allocation3 [shape = 'f32[16,1]{1,0:T(8,128)}', space=vmem, size = 0x2000, scoped, tag = 'scratch operand']
  #allocation4 [shape = 'f32[16,1]{1,0:T(8,128)}', space=vmem, size = 0x2000, scoped, tag = 'scratch operand']
  %s0 = inlined_call_operand.hbm [shape: bf16[16,32], index: 0, kind: input, shape index: {}]
  %s1 = inlined_call_operand.hbm [shape: bf16[32,128], index: 1, kind: input, shape index: {}]
  %s2 = inlined_call_operand.vmem [shape: f32[1,128], index: 2, kind: input, shape index: {}]
  %s3 = inlined_call_operand.hbm [shape: f32[16,128], index: 3, kind: output, shape index: {0}]
  %s4 = inlined_call_operand.vmem [shape: f32[16,1], index: 4, kind: output, shape index: {1}]
  %5 = xla_tuple %s3, %s4
  %s6 = sld [smem:[#allocation0]]
  $region54: #{tpu_custom_call.1} parent=0
    _
  %s8 = ssub.s32 1, %s6
  %s9 = scalar_select 0, %s8, %s6
  $region1: #{tpu_custom_call.1} parent=0
    #allocation5 [shape = 'u8[4096]{0}', space=vmem, size = 0x1000, scoped, tag = 'input window, operand 0, single buffered']
    #allocation6 [shape = 's32[1]{0}', space=sflag, size = 0x4, scoped, tag = 'scoped memory for tpu_custom_call.1']
    #allocation7 [shape = 's32[1]{0}', space=sflag, size = 0x4, scoped, tag = 'scoped memory for tpu_custom_call.1']
    #allocation8 [shape = 'u8[8192]{0}', space=vmem, size = 0x2000, scoped, tag = 'input window, operand 1, single buffered']
    #allocation9 [shape = 's32[1]{0}', space=sflag, size = 0x4, scoped, tag = 'scoped memory for tpu_custom_call.1']
    #allocation10 [shape = 'u8[8192]{0}', space=vmem, size = 0x2000, scoped, tag = 'output window, operand 0, single buffered']
    %10 = vsyncpa [#allocation6], 0
    %11 = vsyncpa [#allocation9], 0
    %12 = vsyncpa [#allocation7], 0
    // Predicated region
    $region2: #{tpu_custom_call.1} parent=1 // pred_check
      _
    $region3: #{tpu_custom_call.1} parent=1 // pred_check_branch
      %14 = sbr.rel (0) target = $region5
    $region4: #{tpu_custom_call.1} parent=1 // pred_region
      %s16 = ssub.s32 128, 128
      %17 = vsyncadd [#allocation6], %s16
      %s18 = sshll.u32 [#allocation5], 4
      %s19 = int_to_ptr.vmem [resolvable:$true] %s18
      %24 = dma.hbm_to_vmem [thread:$0]  %s0, 128, %s19, [#allocation6], 64, 64, 4
    $region5: #{tpu_custom_call.1} parent=1 // pred_fallthru
      _
    // Predicated region
    $region6: #{tpu_custom_call.1} parent=1 // pred_check
      _
    $region7: #{tpu_custom_call.1} parent=1 // pred_check_branch
      %26 = sbr.rel (0) target = $region9
    $region8: #{tpu_custom_call.1} parent=1 // pred_region
      %s28 = ssub.s32 256, 256
      %29 = vsyncadd [#allocation9], %s28
      %s30 = sshll.u32 [#allocation8], 4
      %s31 = int_to_ptr.vmem [resolvable:$true] %s30
      %36 = dma.hbm_to_vmem [thread:$0]  %s1, 256, %s31, [#allocation9], 64, 64, 4
    $region9: #{tpu_custom_call.1} parent=1 // pred_fallthru
      _
    // Predicated region
    $region10: #{tpu_custom_call.1} parent=1 // pred_check
      _
    $region11: #{tpu_custom_call.1} parent=1 // pred_check_branch
      %38 = sbr.rel (0) target = $region13
    $region12: #{tpu_custom_call.1} parent=1 // pred_region
      _
    $region13: #{tpu_custom_call.1} parent=1 // pred_fallthru
      _
    // Predicated region
    $region14: #{tpu_custom_call.1} parent=1 // pred_check
      _
    $region15: #{tpu_custom_call.1} parent=1 // pred_check_branch
      %40 = sbr.rel (0) target = $region17
    $region16: #{tpu_custom_call.1} parent=1 // pred_region
      %41 = dma.done [#allocation6], 128
    $region17: #{tpu_custom_call.1} parent=1 // pred_fallthru
      _
    // Predicated region
    $region18: #{tpu_custom_call.1} parent=1 // pred_check
      _
    $region19: #{tpu_custom_call.1} parent=1 // pred_check_branch
      %43 = sbr.rel (0) target = $region21
    $region20: #{tpu_custom_call.1} parent=1 // pred_region
      %44 = dma.done [#allocation9], 256
    $region21: #{tpu_custom_call.1} parent=1 // pred_fallthru
      _
    %p46 = scmp.eq.s32.totalorder 0, 0
    %p47 = scmp.eq.s32.totalorder 0, 0
    %p48 = pnand %p46, %p47
    %p49 = pneg %p48
    // Predicated region
    $region22: #{tpu_custom_call.1} parent=1 // pred_check
      _
    $region23: #{tpu_custom_call.1} parent=1 // pred_check_branch
      %51 = sbr.rel (%p48) target = $region25
    $region24: #{tpu_custom_call.1} parent=1 // pred_region
      %vm52 = vcmask 7168
      %53 = vst.msk [vmem:[#allocation3] sm:$0xff] %vm52, -inf
      %54 = vst.msk [vmem:[#allocation3 + $0x8] sm:$0xff] %vm52, -inf
      %55 = vst.msk [vmem:[#allocation4] sm:$0xff] %vm52, 0.0
      %56 = vst.msk [vmem:[#allocation4 + $0x8] sm:$0xff] %vm52, 0.0
    $region25: #{tpu_custom_call.1} parent=1 // pred_fallthru
      _
    // Predicated region
    $region26: #{tpu_custom_call.1} parent=1 // pred_check
      %p57 = pneg %p47
    $region27: #{tpu_custom_call.1} parent=1 // pred_check_branch
      %59 = sbr.rel (%p57) target = $region29
    $region28: #{tpu_custom_call.1} parent=1 // pred_region
      %v60 = vld [vmem:[%s2] sm:$0x1]
      %v62 = vlaneseq
      %v63 = vshrl.u32 %v62, 7
      %v64 = vsub.s32 0, %v63
      %v65 = vrot.slane %v60, %v64
      %67 = vst [vmem:[#allocation2] sm:$0xff] %v65
      %68 = vst [vmem:[#allocation2 + $0x8] sm:$0xff] %v65
    $region29: #{tpu_custom_call.1} parent=1 // pred_fallthru
      _
    %v69 = vld [vmem:[#allocation2] sm:$0xff]
    %v70 = vld [vmem:[#allocation2 + $0x8] sm:$0xff]
    %v71 = vld [vmem:[#allocation5] sm:$0xf]
    %v72 = vld [vmem:[#allocation5 + $0x4] sm:$0xf]
    %v73 = vld [vmem:[#allocation8] sm:$0xf]
    %v74 = vld [vmem:[#allocation8 + $0x4] sm:$0xf]
    %v75 = vld [vmem:[#allocation8 + $0x8] sm:$0xf]
    %v76 = vld [vmem:[#allocation8 + $0xc] sm:$0xf]
    %v79 = vunpack.c.l.b16 %v71
    %v80 = vunpack.c.l.b16 %v72
    %v81 = vpack.c.b16 %v80, %v79
    %v86 = vunpack.c.l.b16 %v73
    %v87 = vunpack.c.l.b16 %v74
    %v88 = vunpack.c.l.b16 %v75
    %v89 = vunpack.c.l.b16 %v76
    %v90 = vpack.c.b16 %v87, %v86
    %v91 = vpack.c.b16 %v89, %v88
    %vm94 = vcmask 261120
    %v96 = vsel %vm94, %v81, 0
    %98 = vmatprep.subr.bf16.mxu0 0
    %99 = vmatpush1.bf16.msra.mxu0 0
    %100 = vmatprep.subr.bf16.mxu0 0
    %101 = vmatpush1.bf16.msra.mxu0 0
    %102 = vmatprep.subr.bf16.mxu0 0
    %103 = vmatpush1.bf16.msra.mxu0 0
    %104 = vmatprep.subr.bf16.mxu0 0
    %105 = vmatpush1.bf16.msra.mxu0 0
    %106 = vmatprep.subr.bf16.mxu0 0
    %107 = vmatpush1.bf16.msra.mxu0 0
    %108 = vmatprep.subr.bf16.mxu0 0
    %109 = vmatpush1.bf16.msra.mxu0 0
    %110 = vmatprep.subr.bf16.mxu0 0
    %111 = vmatpush1.bf16.msra.mxu0 %v91
    %112 = vmatprep.subr.bf16.mxu0 0
    %113 = vmatpush1.bf16.msra.mxu0 %v90
    %114 = vmatprep.subr.bf16.mxu0 0
    %115 = vmatpush2.bf16.msra.mxu0 0
    %116 = vmatprep.subr.bf16.mxu0 0
    %117 = vmatpush2.bf16.msra.mxu0 0
    %118 = vmatprep.subr.bf16.mxu0 0
    %119 = vmatpush2.bf16.msra.mxu0 0
    %120 = vmatprep.subr.bf16.mxu0 0
    %121 = vmatpush2.bf16.msra.mxu0 0
    %122 = vmatprep.subr.bf16.mxu0 0
    %123 = vmatpush2.bf16.msra.mxu0 0
    %124 = vmatprep.subr.bf16.mxu0 0
    %125 = vmatpush2.bf16.msra.mxu0 0
    %126 = vmatprep.subr.bf16.mxu0 0
    %127 = vmatpush2.bf16.msra.mxu0 0
    %128 = vmatprep.subr.bf16.mxu0 0
    %129 = vmatpush2.bf16.msra.mxu0 0
    %130 = vmatprep.mubr.bf16.mxu0 0
    %131 = vmatmul.mubr.bf16.gmra.mxu0 %v96
    %v132 = vpop.f32.mrf.mxu0
    %v133 = vadd.f32 0.0, %v132
    %v134 = vpop.f32.mrf.mxu0
    %v135 = vpop.f32.mrf.mxu0
    %v136 = vadd.f32 0.0, %v135
    %v137 = vpop.f32.mrf.mxu0
    %138 = vdwg.mxu0
    %v139 = vadd.f32 %v69, %v133
    %v140 = vadd.f32 %v70, %v136
    %141 = vst [vmem:[#allocation2] sm:$0xff] %v139
    %142 = vst [vmem:[#allocation2 + $0x8] sm:$0xff] %v140
    // Predicated region
    $region30: #{tpu_custom_call.1} parent=1 // pred_check
      %p143 = pneg %p47
    $region31: #{tpu_custom_call.1} parent=1 // pred_check_branch
      %145 = sbr.rel (%p143) target = $region33
    $region32: #{tpu_custom_call.1} parent=1 // pred_region
      %v146 = vld [vmem:[#allocation2] sm:$0xff]
      %v147 = vld [vmem:[#allocation2 + $0x8] sm:$0xff]
      %v148 = vld [vmem:[#allocation3] sm:$0xff]
      %v149 = vld [vmem:[#allocation3 + $0x8] sm:$0xff]
      %150 = vmax.xlane.f32.xlu0 %v146
      %v151 = vpop.xlane.xlu0 %150
      %152 = vmax.xlane.f32.xlu0 %v147
      %v153 = vpop.xlane.xlu0 %152
      %v154 = vmax.f32 %v148, %v151
      %v155 = vmax.f32 %v149, %v153
      %v156 = vld [vmem:[#allocation4] sm:$0xff]
      %v157 = vld [vmem:[#allocation4 + $0x8] sm:$0xff]
      %v158 = vsub.f32 %v148, %v154
      %v159 = vsub.f32 %v149, %v155
      %v160 = vmul.f32 %v158, 1.442695
      %v161 = vpow.pop %v160
      %v162 = vmul.f32 %v159, 1.442695
      %v163 = vpow.pop %v162
      %v164 = vmul.f32 %v156, %v161
      %v165 = vmul.f32 %v157, %v163
      %167 = vset.pattern.permute.xlu0 0
      %168 = vperm.xlu0 %167, %v154
      %v169 = vpop.permute.xlu0 %168
      %172 = vset.pattern.permute.xlu0 0
      %173 = vperm.xlu0 %172, %v155
      %v174 = vpop.permute.xlu0 %173
      %v176 = vsub.f32 %v146, %v169
      %v177 = vsub.f32 %v147, %v174
      %v178 = vmul.f32 %v176, 1.442695
      %v179 = vpow.pop %v178
      %v180 = vmul.f32 %v177, 1.442695
      %v181 = vpow.pop %v180
      %182 = vadd.xlane.f32.xlu0 %v179
      %v183 = vpop.xlane.xlu0 %182
      %184 = vadd.xlane.f32.xlu0 %v181
      %v185 = vpop.xlane.xlu0 %184
      %v186 = vadd.f32 %v164, %v183
      %v187 = vadd.f32 %v165, %v185
      %vm188 = vcmask 7168
      %189 = vst.msk [vmem:[#allocation3] sm:$0xff] %vm188, %v154
      %190 = vst.msk [vmem:[#allocation3 + $0x8] sm:$0xff] %vm188, %v155
      %191 = vst.msk [vmem:[#allocation4] sm:$0xff] %vm188, %v186
      %192 = vst.msk [vmem:[#allocation4 + $0x8] sm:$0xff] %vm188, %v187
      %v193 = vlog2.pop %v186
      %v194 = vmul.f32 %v193, 0.6931472
      %v195 = vlog2.pop %v187
      %v196 = vmul.f32 %v195, 0.6931472
      %v197 = vadd.f32 %v154, %v194
      %v198 = vadd.f32 %v155, %v196
      %200 = vset.pattern.permute.xlu0 0
      %201 = vperm.xlu0 %200, %v197
      %v202 = vpop.permute.xlu0 %201
      %205 = vset.pattern.permute.xlu0 0
      %206 = vperm.xlu0 %205, %v198
      %v207 = vpop.permute.xlu0 %206
      %v209 = vsub.f32 %v146, %v202
      %v210 = vsub.f32 %v147, %v207
      %211 = vst [vmem:[#allocation10] sm:$0xff] %v209
      %212 = vst [vmem:[#allocation10 + $0x8] sm:$0xff] %v210
    $region33: #{tpu_custom_call.1} parent=1 // pred_fallthru
      _
    // Predicated region
    $region34: #{tpu_custom_call.1} parent=1 // pred_check
      _
    $region35: #{tpu_custom_call.1} parent=1 // pred_check_branch
      %214 = sbr.rel (%p48) target = $region37
    $region36: #{tpu_custom_call.1} parent=1 // pred_region
      %v215 = vld [vmem:[#allocation3] sm:$0xff]
      %v216 = vld [vmem:[#allocation3 + $0x8] sm:$0xff]
      %v217 = vld [vmem:[#allocation4] sm:$0xff]
      %v218 = vld [vmem:[#allocation4 + $0x8] sm:$0xff]
      %v219 = vlog2.pop %v217
      %v220 = vmul.f32 %v219, 0.6931472
      %v221 = vlog2.pop %v218
      %v222 = vmul.f32 %v221, 0.6931472
      %v223 = vadd.f32 %v215, %v220
      %v224 = vadd.f32 %v216, %v222
      %vm225 = vcmask 7168
      %226 = vst.msk [vmem:[%s4] sm:$0xff] %vm225, %v223
      %227 = vst.msk [vmem:[%s4 + $0x8] sm:$0xff] %vm225, %v224
    $region37: #{tpu_custom_call.1} parent=1 // pred_fallthru
      _
    // Predicated region
    $region38: #{tpu_custom_call.1} parent=1 // pred_check
      _
    $region39: #{tpu_custom_call.1} parent=1 // pred_check_branch
      %229 = sbr.rel (0) target = $region41
    $region40: #{tpu_custom_call.1} parent=1 // pred_region
      %s231 = ssub.s32 256, 256
      %232 = vsyncadd [#allocation7], %s231
      %s233 = sshll.u32 [#allocation10], 4
      %s234 = int_to_ptr.vmem [resolvable:$true] %s233
      %239 = dma.vmem_to_hbm [thread:$0]  %s234, 256, %s3, [#allocation7], 128, 128, 8
    $region41: #{tpu_custom_call.1} parent=1 // pred_fallthru
      _
    // Predicated region
    $region42: #{tpu_custom_call.1} parent=1 // pred_check
      _
    $region43: #{tpu_custom_call.1} parent=1 // pred_check_branch
      %241 = sbr.rel (0) target = $region45
    $region44: #{tpu_custom_call.1} parent=1 // pred_region
      _
    $region45: #{tpu_custom_call.1} parent=1 // pred_fallthru
      _
    // Predicated region
    $region46: #{tpu_custom_call.1} parent=1 // pred_check
      _
    $region47: #{tpu_custom_call.1} parent=1 // pred_check_branch
      %243 = sbr.rel (0) target = $region49
    $region48: #{tpu_custom_call.1} parent=1 // pred_region
      %244 = dma.done [#allocation7], 256
    $region49: #{tpu_custom_call.1} parent=1 // pred_fallthru
      _
    // Predicated region
    $region50: #{tpu_custom_call.1} parent=1 // pred_check
      _
    $region51: #{tpu_custom_call.1} parent=1 // pred_check_branch
      %246 = sbr.rel (0) target = $region53
    $region52: #{tpu_custom_call.1} parent=1 // pred_region
      _
    $region53: #{tpu_custom_call.1} parent=1 // pred_fallthru
      _
    %247 = vsyncpa [#allocation6], 1
    %248 = vsyncpa [#allocation9], 1
    %249 = vsyncpa [#allocation7], 1

</llo_original>
